<compile_context>
chip_gen: v7x
topology: tpu7x:2x2x1
jax: 0.10.0
libtpu: 0.0.40
codegen_flags: <defaults>
</compile_context>

<pallas_src>
import functools
import math

import jax
import jax.numpy as jnp
import numpy as np
from jax import lax
from jax.experimental import pallas as pl
from jax.experimental.pallas import tpu as pltpu


def _round_up(x, m):
    return (x + m - 1) // m * m


def _mxu_is_wide():
    """True on chips with a 256-wide MXU (v6e / v7x); False on v5e and older."""
    try:
        kind = jax.devices()[0].device_kind.lower()
    except Exception:
        return True
    return not any(t in kind for t in ("v2", "v3", "v4", "v5"))


def _vmem_capacity_bytes():
    try:
        return int(pltpu.get_tpu_info().vmem_capacity_bytes)
    except Exception:
        return 64 * 1024 * 1024          # conservative (v7x per-core VMEM)


def _pick_m(total, target):
    """Pixel-tile size: a divisor of `total`, multiple of 8, closest to target."""
    best = None
    for m in range(8, min(total, 2 * target) + 1, 8):
        if total % m == 0 and (best is None or abs(m - target) < abs(best - target)):
            best = m
    # Fallback: whole axis as one block (block dim == full array dim is legal).
    return best if best is not None else total


def _pick_ct(c_out):
    return 256 if (_mxu_is_wide() and c_out >= 256) else 128


def _vmem_limit(tile_bytes):
    cap = int(0.875 * _vmem_capacity_bytes())
    return int(min(max(2 * tile_bytes + (8 << 20), 32 << 20), max(cap, 32 << 20)))


# --------------------------------------------------------------------------- #
# Kernels
# --------------------------------------------------------------------------- #
def _im2col_kernel(x_ref, w_ref, b_ref, o_ref):
    """Fused (M, K) x (K, CT) matmul + folded-BN bias + ReLU (K = KH*KW*C_in).

    x_ref : (M, K)   bf16   im2col'd input tile
    w_ref : (K, CT)  bf16   binarized weights * BN scale
    b_ref : (1, CT)  f32    folded BN bias
    o_ref : (M, CT)         output tile (bf16 or f32)
    """
    acc = jnp.dot(x_ref[...], w_ref[...], preferred_element_type=jnp.float32)
    o_ref[...] = jnp.maximum(acc + b_ref[...], 0.0).astype(o_ref.dtype)


def _tap_kernel(x_ref, w_ref, b_ref, o_ref, *, M, W, KH):
    """Large-K variant: KH taps accumulated over the resident padded image.

    x_ref : (Hp*W, KW*C_in)    bf16   zero-padded, KW-packed image (flat rows)
    w_ref : (KH, KW*C_in, CT)  bf16
    b_ref : (1, CT)            f32
    o_ref : (M, CT)
    """
    base = pl.program_id(1) * M

    def tap(kh):
        start = base + kh * W
        align = M if kh == 0 else math.gcd(M, W)
        if align % 8 == 0:
            start = pl.multiple_of(start, 8)
        return x_ref[pl.ds(start, M), :]

    acc = jnp.dot(tap(0), w_ref[0], preferred_element_type=jnp.float32)
    for kh in range(1, KH):
        acc += jnp.dot(tap(kh), w_ref[kh], preferred_element_type=jnp.float32)
    o_ref[...] = jnp.maximum(acc + b_ref[...], 0.0).astype(o_ref.dtype)


# --------------------------------------------------------------------------- #
# Wrapper
# --------------------------------------------------------------------------- #
def basic_conv_forward(x_nchw, weight, bn_scale, bn_bias, *,
                       kernel_size=3, padding=1, out_dtype=jnp.bfloat16):
    """BasicConv forward (deconv=False, is_3d=False, bn=True, relu=True), stride 1.

    x_nchw : (N, C_in, H, W) float32
    weight : (C_out, C_in, KH, KW) float32 (raw, pre-binarization)
    """
    N, C_in, H, W = x_nchw.shape
    C_out = weight.shape[0]
    KH = KW = kernel_size
    assert 2 * padding == KH - 1, "stride-1 'same' conv only"

    wide = _mxu_is_wide()
    CT = _pick_ct(C_out)                       # lane-dense output-channel tile
    C_out_p = _round_up(C_out, CT)
    M = _pick_m(H * W, 256 if wide else 128)   # pixel (MXU-M) tile
    n_mb = (H * W) // M
    n_cb = C_out_p // CT
    itemsize_out = jnp.dtype(out_dtype).itemsize

    # --- binarize (sign(0) -> +1) and fold BN scale into the weights ----------
    alpha = jnp.mean(jnp.abs(weight), axis=(1, 2, 3), keepdims=True)
    w_bin = jnp.where(weight >= 0, 1.0, -1.0) * alpha                 # (O,I,KH,KW)
    w_bin = w_bin * bn_scale.reshape(-1, 1, 1, 1).astype(jnp.float32)
    w_hwio = jnp.transpose(w_bin, (2, 3, 1, 0)).astype(jnp.bfloat16)  # (KH,KW,I,O)
    bias = jnp.pad(bn_bias.astype(jnp.float32),
                   (0, C_out_p - C_out)).reshape(1, C_out_p)

    # --- glue: NCHW -> NHWC in bf16 + spatial zero-pad (fused HBM pass) -------
    x_bf = jnp.transpose(x_nchw, (0, 2, 3, 1)).astype(jnp.bfloat16)   # (N,H,W,I)
    xp = jnp.pad(x_bf, ((0, 0), (padding, padding), (padding, padding), (0, 0)))

    fold_kh = (KW * C_in) < (256 if wide else 128)

    if fold_kh:
        # ---- path A: full im2col, K = KH*KW*C_in, one matmul per grid step ---
        K = KH * KW * C_in
        cols = [xp[:, kh:kh + H, kw:kw + W, :]
                for kh in range(KH) for kw in range(KW)]
        x_cols = jnp.concatenate(cols, axis=-1).reshape(N, H * W, K)
        w_pack = jnp.pad(w_hwio.reshape(K, C_out),
                         ((0, 0), (0, C_out_p - C_out)))

        tile_bytes = (2 * _round_up(M, 16) * _round_up(K, 128) * 2        # x
                      + 2 * _round_up(K, 16) * CT * 2                     # w
                      + 2 * 8 * CT * 4                                    # bias
                      + 2 * _round_up(M, 16) * CT * itemsize_out)         # out

        out_p = pl.pallas_call(
            _im2col_kernel,
            out_shape=jax.ShapeDtypeStruct((N, H * W, C_out_p), out_dtype),
            grid_spec=pltpu.PrefetchScalarGridSpec(
                num_scalar_prefetch=0,
                grid=(N, n_mb, n_cb),          # x tile resident across cb
                in_specs=[
                    pl.BlockSpec((None, M, K), lambda n, mb, cb: (n, mb, 0)),
                    pl.BlockSpec((K, CT),      lambda n, mb, cb: (0, cb)),
                    pl.BlockSpec((1, CT),      lambda n, mb, cb: (0, cb)),
                ],
                out_specs=pl.BlockSpec((None, M, CT),
                                       lambda n, mb, cb: (n, mb, cb)),
            ),
            compiler_params=pltpu.CompilerParams(
                dimension_semantics=("parallel", "parallel", "parallel"),
                vmem_limit_bytes=_vmem_limit(tile_bytes)),
        )(x_cols, w_pack, bias)
    else:
        # ---- path B: KW folded into K; KH taps over the resident image -------
        KWC = KW * C_in
        Hp = H + KH - 1
        x_kw = jnp.concatenate([xp[:, :, kw:kw + W, :] for kw in range(KW)],
                               axis=-1).reshape(N, Hp * W, KWC)
        w_pack = jnp.pad(w_hwio.reshape(KH, KWC, C_out),
                         ((0, 0), (0, 0), (0, C_out_p - C_out)))

        tile_bytes = (2 * _round_up(Hp * W, 16) * _round_up(KWC, 128) * 2  # x
                      + 2 * KH * _round_up(KWC, 16) * CT * 2               # w
                      + 2 * 8 * CT * 4                                     # bias
                      + 2 * _round_up(M, 16) * CT * itemsize_out)          # out

        kernel = functools.partial(_tap_kernel, M=M, W=W, KH=KH)
        out_p = pl.pallas_call(
            kernel,
            out_shape=jax.ShapeDtypeStruct((N, H * W, C_out_p), out_dtype),
            grid_spec=pltpu.PrefetchScalarGridSpec(
                num_scalar_prefetch=0,
                grid=(N, n_mb, n_cb),
                in_specs=[
                    # whole padded image for batch n; block index constant
                    # across (mb, cb) -> Pallas skips the redundant re-DMA.
                    pl.BlockSpec((None, Hp * W, KWC), lambda n, mb, cb: (n, 0, 0)),
                    pl.BlockSpec((KH, KWC, CT),       lambda n, mb, cb: (0, 0, cb)),
                    pl.BlockSpec((1, CT),             lambda n, mb, cb: (0, cb)),
                ],
                out_specs=pl.BlockSpec((None, M, CT),
                                       lambda n, mb, cb: (n, mb, cb)),
            ),
            compiler_params=pltpu.CompilerParams(
                dimension_semantics=("parallel", "parallel", "parallel"),
                vmem_limit_bytes=_vmem_limit(tile_bytes)),
        )(x_kw, w_pack, bias)

    # --- glue: drop channel padding, (N, H*W, C) -> NCHW ----------------------
    out = out_p[..., :C_out].reshape(N, H, W, C_out)
    return jnp.transpose(out, (0, 3, 1, 2))


# --------------------------------------------------------------------------- #
# Pure-JAX reference (same bf16 operand quantization, f32 output)
# --------------------------------------------------------------------------- #
def _reference(x_nchw, weight, bn_scale, bn_bias, padding=1):
    alpha = jnp.mean(jnp.abs(weight), axis=(1, 2, 3), keepdims=True)
    w_bin = jnp.where(weight >= 0, 1.0, -1.0) * alpha
    w_s = w_bin * bn_scale.reshape(-1, 1, 1, 1)
    xb = x_nchw.astype(jnp.bfloat16).astype(jnp.float32)
    wb = w_s.astype(jnp.bfloat16).astype(jnp.float32)
    y = lax.conv_general_dilated(
        xb, wb, window_strides=(1, 1),
        padding=((padding, padding), (padding, padding)),
        dimension_numbers=("NCHW", "OIHW", "NCHW"),
        preferred_element_type=jnp.float32,
        precision=lax.Precision.HIGHEST)
    y = y + bn_bias.reshape(1, -1, 1, 1)
    return jnp.maximum(y, 0.0)


if __name__ == "__main__":
    key = jax.random.PRNGKey(0)
    k1, k2 = jax.random.split(key)

    N, C_in, C_out, H, W = 2, 4, 8, 16, 16
    KH = KW = 3

    x = jax.random.normal(k1, (N, C_in, H, W), jnp.float32)
    weight = jax.random.normal(k2, (C_out, C_in, KH, KW), jnp.float32) * 0.1

    # BatchNorm2d default-init, folded for inference.
    eps = 1e-5
    gamma = jnp.ones((C_out,), jnp.float32)
    beta = jnp.zeros((C_out,), jnp.float32)
    run_mean = jnp.zeros((C_out,), jnp.float32)
    run_var = jnp.ones((C_out,), jnp.float32)
    bn_scale = gamma / jnp.sqrt(run_var + eps)
    bn_bias = beta - run_mean * bn_scale

    fwd = jax.jit(functools.partial(basic_conv_forward,
                                    kernel_size=3, padding=1,
                                    out_dtype=jnp.bfloat16))
    out = jax.block_until_ready(fwd(x, weight, bn_scale, bn_bias))

    ref = jax.block_until_ready(_reference(x, weight, bn_scale, bn_bias))
    np.testing.assert_allclose(np.asarray(out).astype(np.float32),
                               np.asarray(ref), rtol=2e-2, atol=2e-2)
    print("KERNEL_OK")
</pallas_src>

<mosaic_0001>
module attributes {stable_mosaic.version = 11 : i64} {
  func.func @_im2col_kernel(%arg0: i32, %arg1: i32, %arg2: i32, %arg3: memref<1x256x36xbf16, #tpu.memory_space<vmem>>, %arg4: memref<36x128xbf16, #tpu.memory_space<vmem>>, %arg5: memref<1x128xf32, #tpu.memory_space<vmem>>, %arg6: memref<1x256x128xbf16, #tpu.memory_space<vmem>>) attributes {dimension_semantics = [#tpu.dimension_semantics<parallel>, #tpu.dimension_semantics<parallel>, #tpu.dimension_semantics<parallel>], iteration_bounds = array<i64: 2, 1, 1>, scalar_prefetch = 0 : i64, scratch_operands = 0 : i64, tpu.core_type = #tpu.core_type<tc>, window_params = [{transform_indices = @transform_0, window_bounds = array<i64: 1, 256, 36>}, {transform_indices = @transform_1, window_bounds = array<i64: 36, 128>}, {transform_indices = @transform_2, window_bounds = array<i64: 1, 128>}, {transform_indices = @transform_3, window_bounds = array<i64: 1, 256, 128>}]} {
    %c0 = arith.constant 0 : index
    %c0_0 = arith.constant 0 : index
    %c0_1 = arith.constant 0 : index
    %0 = vector.load %arg3[%c0, %c0_0, %c0_1] : memref<1x256x36xbf16, #tpu.memory_space<vmem>>, vector<1x256x36xbf16>
    %1 = vector.shape_cast %0 : vector<1x256x36xbf16> to vector<256x36xbf16>
    %c0_2 = arith.constant 0 : index
    %c0_3 = arith.constant 0 : index
    %2 = vector.load %arg4[%c0_2, %c0_3] : memref<36x128xbf16, #tpu.memory_space<vmem>>, vector<36x128xbf16>
    %cst = arith.constant dense<0.000000e+00> : vector<256x128xf32>
    %3 = tpu.matmul %1, %2, %cst {dimension_numbers = #tpu.dot_dimension_numbers<[1], [0], [0], [1], [0, 0, 1, 1], [], []>} : vector<256x36xbf16>, vector<36x128xbf16>, vector<256x128xf32> -> vector<256x128xf32>
    %c0_4 = arith.constant 0 : index
    %c0_5 = arith.constant 0 : index
    %4 = vector.load %arg5[%c0_4, %c0_5] : memref<1x128xf32, #tpu.memory_space<vmem>>, vector<1x128xf32>
    %5 = vector.broadcast %4 : vector<1x128xf32> to vector<256x128xf32>
    %6 = arith.addf %3, %5 : vector<256x128xf32>
    %cst_6 = arith.constant 0.000000e+00 : f32
    %7 = vector.broadcast %cst_6 : f32 to vector<256x128xf32>
    %8 = arith.maximumf %6, %7 : vector<256x128xf32>
    %9 = arith.truncf %8 : vector<256x128xf32> to vector<256x128xbf16>
    %c0_7 = arith.constant 0 : index
    %c0_8 = arith.constant 0 : index
    %c0_9 = arith.constant 0 : index
    %10 = vector.load %arg6[%c0_7, %c0_8, %c0_9] : memref<1x256x128xbf16, #tpu.memory_space<vmem>>, vector<1x256x128xbf16>
    %11 = vector.shape_cast %10 : vector<1x256x128xbf16> to vector<256x128xbf16>
    %12 = vector.shape_cast %9 : vector<256x128xbf16> to vector<1x256x128xbf16>
    tpu.vector_store %arg6[%c0_7, %c0_8, %c0_9], %12 {strides = array<i32>} : memref<1x256x128xbf16, #tpu.memory_space<vmem>>, vector<1x256x128xbf16>,
    return
  }
  func.func @transform_0(%arg0: i32, %arg1: i32, %arg2: i32) -> (i32, i32, i32) {
    %c0_i32 = arith.constant 0 : i32
    %c0_i32_0 = arith.constant 0 : i32
    return %arg0, %arg1, %c0_i32 : i32, i32, i32
  }
  func.func @transform_1(%arg0: i32, %arg1: i32, %arg2: i32) -> (i32, i32) {
    %c0_i32 = arith.constant 0 : i32
    %c0_i32_0 = arith.constant 0 : i32
    return %c0_i32, %arg2 : i32, i32
  }
  func.func @transform_2(%arg0: i32, %arg1: i32, %arg2: i32) -> (i32, i32) {
    %c0_i32 = arith.constant 0 : i32
    %c0_i32_0 = arith.constant 0 : i32
    return %c0_i32, %arg2 : i32, i32
  }
  func.func @transform_3(%arg0: i32, %arg1: i32, %arg2: i32) -> (i32, i32, i32) {
    %c0_i32 = arith.constant 0 : i32
    return %arg0, %arg1, %arg2 : i32, i32, i32
  }
}

</mosaic_0001>

<llo_original>
// kernel: basic_conv_forward.1
$region0: #{basic_conv_forward.1}
  #allocation0 [shape = 'u32[]', space=smem, size = 0x4, offset = 0x4, fixed_abs, tag = 'smem constant byte address 0x4 - core index']
  #allocation1 [shape = 'u32[144,128]{1,0:T(1,128)}', space=vmem, size = 0x12000, scoped, tag = 'internal scratch']
  %s0 = inlined_call_operand.vmem [shape: bf16[2,256,36], index: 0, kind: input, shape index: {}]
  %s1 = inlined_call_operand.vmem [shape: bf16[36,128], index: 1, kind: input, shape index: {}]
  %s2 = inlined_call_operand.vmem [shape: f32[1,128], index: 2, kind: input, shape index: {}]
  %s3 = inlined_call_operand.vmem [shape: bf16[2,256,128], index: 3, kind: output, shape index: {}]
  %s4 = sld [smem:[#allocation0]]
  $region45: #{basic_conv_forward.1} parent=0
    _
  %s6 = ssub.s32 1, %s4
  %s7 = scalar_select 0, %s6, %s4
  loop: start=0, step=1, limit=4
  $region2: #{basic_conv_forward.1} parent=0 // loop_pre_header
    _
  $region3: #{basic_conv_forward.1} parent=0 // loop_header
    %s9 = sphi 0, %s13
    %p10 = scmp.ge.s32.totalorder %s9, 4
    %s16 = sphi 0, %s35
    %s17 = sphi 0, %s31
    %s18 = sphi 0, %s27
    %s19 = sphi 0, %s16
    %s20 = sphi 0, %s17
    %s21 = sphi 0, %s18
    %s22 = sphi 0, %s19
    %s23 = sphi 0, %s20
    %s24 = sphi 0, %s21
    %s40 = sphi 0, %s42
    %s43 = sphi 0, %s40
    %s44 = sphi 0, %s43
    %s60 = sphi 0, %s44
    %s66 = sphi 0, %s68
    %s69 = sphi 0, %s66
    %s70 = sphi 0, %s69
    %s86 = sphi 0, %s70
    %s92 = sphi 0, %s94
    %s95 = sphi 0, %s92
    %s96 = sphi 0, %s95
    %s112 = sphi 0, %s96
    %s122 = sphi 0, %s124
    %s125 = sphi 0, %s122
    %s126 = sphi 0, %s125
    %s142 = sphi 0, %s126
  $region4: #{basic_conv_forward.1} parent=0 // loop_header_branch
    %12 = sbr.rel (%p10) target = $region8
  $region5: #{basic_conv_forward.1} parent=0 // loop_body
    %s14 = ssub.s32 %s9, 1
    %s15 = ssub.s32 %s9, 2
    %s25 = sadd.s32 1, %s18
    %p26 = scmp.ge.s32.totalorder %s25, 1
    %s27 = scalar_select %p26, 0, %s25
    %s28 = sadd.s32 1, %s17
    %s29 = scalar_select %p26, %s28, %s17
    %p30 = scmp.ge.s32.totalorder %s29, 1
    %s31 = scalar_select %p30, 0, %s29
    %s32 = sadd.s32 1, %s16
    %s33 = scalar_select %p30, %s32, %s16
    %p34 = scmp.ge.s32.totalorder %s33, 2
    %s35 = scalar_select %p34, 0, %s33
    %s36 = ssub.s32 %s16, %s35
    %s37 = ssub.s32 %s17, %s31
    %s38 = sor.u32 %s36, %s37
    %p39 = scmp.eq.s32.totalorder %s38, 0
    %s41 = sadd.s32 %s40, 1
    %s42 = scalar_select %p39, %s40, %s41
    %p45 = pneg %p39
    %p46 = scmp.eq.s32.totalorder %s9, 1
    %p47 = por %p45, %p46
    %p48 = scmp.ne.s32.totalorder %s40, %s43
    %p49 = scmp.eq.s32.totalorder %s9, 0
    %p50 = por %p48, %p49
    %p51 = scmp.ne.s32.totalorder %s40, %s43
    %p52 = scmp.eq.s32.totalorder %s14, 1
    %p53 = por %p51, %p52
    %p54 = scmp.ne.s32.totalorder %s43, %s44
    %p55 = scmp.eq.s32.totalorder %s14, 0
    %p56 = por %p54, %p55
    %p57 = scmp.ne.s32.totalorder %s43, %s44
    %p58 = scmp.eq.s32.totalorder %s15, 1
    %p59 = por %p57, %p58
    %p61 = scmp.ne.s32.totalorder %s44, %s60
    %p62 = scmp.eq.s32.totalorder %s15, 0
    %p63 = por %p61, %p62
    %s64 = ssub.s32 %s18, %s27
    %p65 = scmp.eq.s32.totalorder %s64, 0
    %s67 = sadd.s32 %s66, 1
    %s68 = scalar_select %p65, %s66, %s67
    %p71 = pneg %p65
    %p72 = scmp.eq.s32.totalorder %s9, 1
    %p73 = por %p71, %p72
    %p74 = scmp.ne.s32.totalorder %s66, %s69
    %p75 = scmp.eq.s32.totalorder %s9, 0
    %p76 = por %p74, %p75
    %p77 = scmp.ne.s32.totalorder %s66, %s69
    %p78 = scmp.eq.s32.totalorder %s14, 1
    %p79 = por %p77, %p78
    %p80 = scmp.ne.s32.totalorder %s69, %s70
    %p81 = scmp.eq.s32.totalorder %s14, 0
    %p82 = por %p80, %p81
    %p83 = scmp.ne.s32.totalorder %s69, %s70
    %p84 = scmp.eq.s32.totalorder %s15, 1
    %p85 = por %p83, %p84
    %p87 = scmp.ne.s32.totalorder %s70, %s86
    %p88 = scmp.eq.s32.totalorder %s15, 0
    %p89 = por %p87, %p88
    %s90 = ssub.s32 %s18, %s27
    %p91 = scmp.eq.s32.totalorder %s90, 0
    %s93 = sadd.s32 %s92, 1
    %s94 = scalar_select %p91, %s92, %s93
    %p97 = pneg %p91
    %p98 = scmp.eq.s32.totalorder %s9, 1
    %p99 = por %p97, %p98
    %p100 = scmp.ne.s32.totalorder %s92, %s95
    %p101 = scmp.eq.s32.totalorder %s9, 0
    %p102 = por %p100, %p101
    %p103 = scmp.ne.s32.totalorder %s92, %s95
    %p104 = scmp.eq.s32.totalorder %s14, 1
    %p105 = por %p103, %p104
    %p106 = scmp.ne.s32.totalorder %s95, %s96
    %p107 = scmp.eq.s32.totalorder %s14, 0
    %p108 = por %p106, %p107
    %p109 = scmp.ne.s32.totalorder %s95, %s96
    %p110 = scmp.eq.s32.totalorder %s15, 1
    %p111 = por %p109, %p110
    %p113 = scmp.ne.s32.totalorder %s96, %s112
    %p114 = scmp.eq.s32.totalorder %s15, 0
    %p115 = por %p113, %p114
    %s116 = ssub.s32 %s16, %s35
    %s117 = ssub.s32 %s17, %s31
    %s118 = sor.u32 %s116, %s117
    %s119 = ssub.s32 %s18, %s27
    %s120 = sor.u32 %s118, %s119
    %p121 = scmp.eq.s32.totalorder %s120, 0
    %s123 = sadd.s32 %s122, 1
    %s124 = scalar_select %p121, %s122, %s123
    %p127 = pneg %p121
    %p128 = scmp.eq.s32.totalorder %s9, 1
    %p129 = por %p127, %p128
    %p130 = scmp.ne.s32.totalorder %s122, %s125
    %p131 = scmp.eq.s32.totalorder %s9, 0
    %p132 = por %p130, %p131
    %p133 = scmp.ne.s32.totalorder %s122, %s125
    %p134 = scmp.eq.s32.totalorder %s14, 1
    %p135 = por %p133, %p134
    %p136 = scmp.ne.s32.totalorder %s125, %s126
    %p137 = scmp.eq.s32.totalorder %s14, 0
    %p138 = por %p136, %p137
    %p139 = scmp.ne.s32.totalorder %s125, %s126
    %p140 = scmp.eq.s32.totalorder %s15, 1
    %p141 = por %p139, %p140
    %p143 = scmp.ne.s32.totalorder %s126, %s142
    %p144 = scmp.eq.s32.totalorder %s15, 0
    %p145 = por %p143, %p144
    %p146 = scmp.le.s32.totalorder 1, %s9
    %p147 = scmp.lt.s32.totalorder %s9, 3
    %p148 = pnand %p146, %p147
    %p149 = pneg %p148
    // Predicated region
    $region9: #{basic_conv_forward.1} parent=5 // pred_check
      _
    $region10: #{basic_conv_forward.1} parent=5 // pred_check_branch
      %151 = sbr.rel (%p148) target = $region12
    $region11: #{basic_conv_forward.1} parent=5 // pred_region
      %s152 = ssub.s32 %s9, 1
      // Predicated region
      $region13: #{basic_conv_forward.1} parent=11 // pred_check
        %p153 = pneg %p82
      $region14: #{basic_conv_forward.1} parent=11 // pred_check_branch
        %155 = sbr.rel (%p153) target = $region16
      $region15: #{basic_conv_forward.1} parent=11 // pred_region
        %p156 = scmp.lt.s32.totalorder %s21, 0
        %s157 = scalar_select %p156, %s21, 0
        %s158 = smul.addr %s157, 4
        %s159 = scalar_lea.vmem %s1, %s158
      $region16: #{basic_conv_forward.1} parent=11 // pred_fallthru
        _
      // Predicated region
      $region17: #{basic_conv_forward.1} parent=11 // pred_check
        %p160 = pneg %p108
      $region18: #{basic_conv_forward.1} parent=11 // pred_check_branch
        %162 = sbr.rel (%p160) target = $region20
      $region19: #{basic_conv_forward.1} parent=11 // pred_region
        %p163 = scmp.lt.s32.totalorder %s21, 0
        %s164 = scalar_select %p163, %s21, 0
        %s165 = scalar_lea.vmem %s2, %s164
      $region20: #{basic_conv_forward.1} parent=11 // pred_fallthru
        _
    $region12: #{basic_conv_forward.1} parent=5 // pred_fallthru
      _
    %p166 = scmp.lt.s32.totalorder %s9, 2
    // Predicated region
    $region21: #{basic_conv_forward.1} parent=5 // pred_check
      %p167 = pneg %p166
    $region22: #{basic_conv_forward.1} parent=5 // pred_check_branch
      %169 = sbr.rel (%p167) target = $region24
    $region23: #{basic_conv_forward.1} parent=5 // pred_region
      // Predicated region
      $region25: #{basic_conv_forward.1} parent=23 // pred_check
        %p170 = pneg %p50
      $region26: #{basic_conv_forward.1} parent=23 // pred_check_branch
        %172 = sbr.rel (%p170) target = $region28
      $region27: #{basic_conv_forward.1} parent=23 // pred_region
        %s173 = smul.u32 32, %s17
        %p174 = scmp.lt.s32.totalorder %s16, 1
        %s175 = scalar_select %p174, %s16, 1
        %p176 = scmp.lt.s32.totalorder %s173, 31
        %s177 = scalar_select %p176, %s173, 31
        %s178 = smul.addr %s175, 32
        %s179 = sadd.s32 %s177, %s178
        %s180 = smul.addr %s179, 4
        %s181 = scalar_lea.vmem %s0, %s180
        %s182 = smul.u32 32, %s17
      $region28: #{basic_conv_forward.1} parent=23 // pred_fallthru
        _
    $region24: #{basic_conv_forward.1} parent=5 // pred_fallthru
      _
    %p183 = scmp.le.s32.totalorder 1, %s9
    %p184 = scmp.lt.s32.totalorder %s9, 3
    %p185 = pnand %p183, %p184
    %p186 = pneg %p185
    // Predicated region
    $region29: #{basic_conv_forward.1} parent=5 // pred_check
      _
    $region30: #{basic_conv_forward.1} parent=5 // pred_check_branch
      %188 = sbr.rel (%p185) target = $region32
    $region31: #{basic_conv_forward.1} parent=5 // pred_region
      %s189 = ssub.s32 %s9, 1
      %s190 = smul.u32 32, %s20
      %p191 = scmp.lt.s32.totalorder %s19, 1
      %s192 = scalar_select %p191, %s19, 1
      %p193 = scmp.lt.s32.totalorder %s190, 31
      %s194 = scalar_select %p193, %s190, 31
      %s195 = smul.addr %s192, 32
      %s196 = sadd.s32 %s194, %s195
      %s197 = smul.addr %s196, 4
      %s198 = scalar_lea.vmem %s0, %s197
      %p199 = pneg %p56
      %p200 = pneg %p53
      %p201 = scmp.lt.s32.totalorder %s21, 0
      %s202 = scalar_select %p201, %s21, 0
      %s203 = smul.addr %s202, 4
      %s204 = scalar_lea.vmem %s1, %s203
      %p205 = pneg %p82
      %p206 = pneg %p79
      %p207 = scmp.lt.s32.totalorder %s21, 0
      %s208 = scalar_select %p207, %s21, 0
      %s209 = scalar_lea.vmem %s2, %s208
      %p210 = pneg %p108
      %p211 = pneg %p105
      %p212 = pneg %p138
      %p213 = pneg %p135
      %s214 = smul.u32 32, %s20
      %p215 = scmp.lt.s32.totalorder %s19, 1
      %s216 = scalar_select %p215, %s19, 1
      %p217 = scmp.lt.s32.totalorder %s214, 31
      %s218 = scalar_select %p217, %s214, 31
      %p219 = scmp.lt.s32.totalorder %s21, 0
      %s220 = scalar_select %p219, %s21, 0
      %s221 = sadd.s32 %s220, %s218
      %s222 = smul.addr %s216, 32
      %s223 = sadd.s32 %s221, %s222
      %s224 = smul.addr %s223, 4
      %s225 = scalar_lea.vmem %s3, %s224
      %s226 = smul.u32 32, %s20
      %p227 = scmp.lt.s32.totalorder %s19, 1
      %s228 = scalar_select %p227, %s19, 1
      %p229 = scmp.lt.s32.totalorder %s226, 31
      %s230 = scalar_select %p229, %s226, 31
      %s231 = smul.addr %s228, 32
      %s232 = sadd.s32 %s230, %s231
      %s233 = smul.addr %s232, 4
      %s234 = scalar_lea.vmem %s0, %s233
      %s235 = smul.u32 32, %s20
      %p236 = scmp.lt.s32.totalorder %s21, 0
      %s237 = scalar_select %p236, %s21, 0
      %s238 = smul.addr %s237, 4
      %s239 = scalar_lea.vmem %s1, %s238
      %p240 = scmp.lt.s32.totalorder %s21, 0
      %s241 = scalar_select %p240, %s21, 0
      %s242 = scalar_lea.vmem %s2, %s241
      %s243 = smul.u32 32, %s20
      %p244 = scmp.lt.s32.totalorder %s19, 1
      %s245 = scalar_select %p244, %s19, 1
      %p246 = scmp.lt.s32.totalorder %s243, 31
      %s247 = scalar_select %p246, %s243, 31
      %p248 = scmp.lt.s32.totalorder %s21, 0
      %s249 = scalar_select %p248, %s21, 0
      %s250 = sadd.s32 %s249, %s247
      %s251 = smul.addr %s245, 32
      %s252 = sadd.s32 %s250, %s251
      %s253 = smul.addr %s252, 4
      %s254 = scalar_lea.vmem %s3, %s253
      %s255 = smul.u32 32, %s20
      %v257 = vld [vmem:[%s234] sm:$0xf]
      %v258 = vld [vmem:[%s234 + $0x4] sm:$0xf]
      %v259 = vld [vmem:[%s234 + $0x8] sm:$0xf]
      %v260 = vld [vmem:[%s234 + $0xc] sm:$0xf]
      %v261 = vld [vmem:[%s234 + $0x10] sm:$0xf]
      %v262 = vld [vmem:[%s234 + $0x14] sm:$0xf]
      %v263 = vld [vmem:[%s234 + $0x18] sm:$0xf]
      %v264 = vld [vmem:[%s234 + $0x1c] sm:$0xf]
      %v265 = vld [vmem:[%s234 + $0x20] sm:$0xf]
      %v266 = vld [vmem:[%s234 + $0x24] sm:$0xf]
      %v267 = vld [vmem:[%s234 + $0x28] sm:$0xf]
      %v268 = vld [vmem:[%s234 + $0x2c] sm:$0xf]
      %v269 = vld [vmem:[%s234 + $0x30] sm:$0xf]
      %v270 = vld [vmem:[%s234 + $0x34] sm:$0xf]
      %v271 = vld [vmem:[%s234 + $0x38] sm:$0xf]
      %v272 = vld [vmem:[%s234 + $0x3c] sm:$0xf]
      %v273 = vld [vmem:[%s234 + $0x40] sm:$0xf]
      %v274 = vld [vmem:[%s234 + $0x44] sm:$0xf]
      %v275 = vld [vmem:[%s234 + $0x48] sm:$0xf]
      %v276 = vld [vmem:[%s234 + $0x4c] sm:$0xf]
      %v277 = vld [vmem:[%s234 + $0x50] sm:$0xf]
      %v278 = vld [vmem:[%s234 + $0x54] sm:$0xf]
      %v279 = vld [vmem:[%s234 + $0x58] sm:$0xf]
      %v280 = vld [vmem:[%s234 + $0x5c] sm:$0xf]
      %v281 = vld [vmem:[%s234 + $0x60] sm:$0xf]
      %v282 = vld [vmem:[%s234 + $0x64] sm:$0xf]
      %v283 = vld [vmem:[%s234 + $0x68] sm:$0xf]
      %v284 = vld [vmem:[%s234 + $0x6c] sm:$0xf]
      %v285 = vld [vmem:[%s234 + $0x70] sm:$0xf]
      %v286 = vld [vmem:[%s234 + $0x74] sm:$0xf]
      %v287 = vld [vmem:[%s234 + $0x78] sm:$0xf]
      %v288 = vld [vmem:[%s234 + $0x7c] sm:$0xf]
      %v289 = vld [vmem:[%s239] sm:$0xf]
      %v290 = vld [vmem:[%s239 + $0x4] sm:$0xf]
      %v291 = vld [vmem:[%s239 + $0x8] sm:$0xf]
      %v292 = vld [vmem:[%s239 + $0xc] sm:$0xf]
      %v293 = vld [vmem:[%s239 + $0x10] sm:$0x3]
      %v294 = vld [vmem:[%s242] sm:$0x1]
      %v296 = vlaneseq
      %v297 = vshrl.u32 %v296, 7
      %v298 = vsub.s32 0, %v297
      %v299 = vrot.slane %v294, %v298
      %v333 = vunpack.c.l.b16 %v257
      %v334 = vunpack.c.l.b16 %v258
      %v335 = vunpack.c.l.b16 %v259
      %v336 = vunpack.c.l.b16 %v260
      %v337 = vunpack.c.l.b16 %v261
      %v338 = vunpack.c.l.b16 %v262
      %v339 = vunpack.c.l.b16 %v263
      %v340 = vunpack.c.l.b16 %v264
      %v341 = vunpack.c.l.b16 %v265
      %v342 = vunpack.c.l.b16 %v266
      %v343 = vunpack.c.l.b16 %v267
      %v344 = vunpack.c.l.b16 %v268
      %v345 = vunpack.c.l.b16 %v269
      %v346 = vunpack.c.l.b16 %v270
      %v347 = vunpack.c.l.b16 %v271
      %v348 = vunpack.c.l.b16 %v272
      %v349 = vunpack.c.l.b16 %v273
      %v350 = vunpack.c.l.b16 %v274
      %v351 = vunpack.c.l.b16 %v275
      %v352 = vunpack.c.l.b16 %v276
      %v353 = vunpack.c.l.b16 %v277
      %v354 = vunpack.c.l.b16 %v278
      %v355 = vunpack.c.l.b16 %v279
      %v356 = vunpack.c.l.b16 %v280
      %v357 = vunpack.c.l.b16 %v281
      %v358 = vunpack.c.l.b16 %v282
      %v359 = vunpack.c.l.b16 %v283
      %v360 = vunpack.c.l.b16 %v284
      %v361 = vunpack.c.l.b16 %v285
      %v362 = vunpack.c.l.b16 %v286
      %v363 = vunpack.c.l.b16 %v287
      %v364 = vunpack.c.l.b16 %v288
      %v365 = vpack.c.b16 %v334, %v333
      %v366 = vpack.c.b16 %v336, %v335
      %v367 = vpack.c.b16 %v338, %v337
      %v368 = vpack.c.b16 %v340, %v339
      %v369 = vpack.c.b16 %v342, %v341
      %v370 = vpack.c.b16 %v344, %v343
      %v371 = vpack.c.b16 %v346, %v345
      %v372 = vpack.c.b16 %v348, %v347
      %v373 = vpack.c.b16 %v350, %v349
      %v374 = vpack.c.b16 %v352, %v351
      %v375 = vpack.c.b16 %v354, %v353
      %v376 = vpack.c.b16 %v356, %v355
      %v377 = vpack.c.b16 %v358, %v357
      %v378 = vpack.c.b16 %v360, %v359
      %v379 = vpack.c.b16 %v362, %v361
      %v380 = vpack.c.b16 %v364, %v363
      %v386 = vunpack.c.l.b16 %v289
      %v387 = vunpack.c.l.b16 %v290
      %v388 = vunpack.c.l.b16 %v291
      %v389 = vunpack.c.l.b16 %v292
      %v390 = vunpack.c.l.b16 %v293
      %v391 = vpack.c.b16 %v387, %v386
      %v392 = vpack.c.b16 %v389, %v388
      %v393 = vpack.c.b16 %v390, %v390
      %vm396 = vcmask 293888
      %v398 = vsel %vm396, %v365, 0
      %v401 = vsel %vm396, %v366, 0
      %v404 = vsel %vm396, %v367, 0
      %v407 = vsel %vm396, %v368, 0
      %v410 = vsel %vm396, %v369, 0
      %v413 = vsel %vm396, %v370, 0
      %v416 = vsel %vm396, %v371, 0
      %v419 = vsel %vm396, %v372, 0
      %v422 = vsel %vm396, %v373, 0
      %v425 = vsel %vm396, %v374, 0
      %v428 = vsel %vm396, %v375, 0
      %v431 = vsel %vm396, %v376, 0
      %v434 = vsel %vm396, %v377, 0
      %v437 = vsel %vm396, %v378, 0
      %v440 = vsel %vm396, %v379, 0
      %v443 = vsel %vm396, %v380, 0
      %vm445 = vcmask 1041408
      %v447 = vsel %vm445, %v393, 0
      %449 = vmatprep.subr.bf16.mxu0 0
      %450 = vmatpush1.bf16.msra.mxu0 %v391
      %451 = vmatprep.subr.bf16.mxu0 0
      %452 = vmatpush1.bf16.msra.mxu0 %v392
      %453 = vmatprep.subr.bf16.mxu0 0
      %454 = vmatpush1.bf16.msra.mxu0 %v447
      %455 = vmatprep.subr.bf16.mxu0 0
      %456 = vmatpush1.bf16.msra.mxu0 0
      %457 = vmatprep.subr.bf16.mxu0 0
      %458 = vmatpush1.bf16.msra.mxu0 0
      %459 = vmatprep.subr.bf16.mxu0 0
      %460 = vmatpush1.bf16.msra.mxu0 0
      %461 = vmatprep.subr.bf16.mxu0 0
      %462 = vmatpush1.bf16.msra.mxu0 0
      %463 = vmatprep.subr.bf16.mxu0 0
      %464 = vmatpush1.bf16.msra.mxu0 0
      %465 = vmatprep.subr.bf16.mxu0 0
      %466 = vmatpush1.bf16.msra.mxu0 0
      %467 = vmatprep.subr.bf16.mxu0 0
      %468 = vmatpush1.bf16.msra.mxu0 0
      %469 = vmatprep.subr.bf16.mxu0 0
      %470 = vmatpush1.bf16.msra.mxu0 0
      %471 = vmatprep.subr.bf16.mxu0 0
      %472 = vmatpush1.bf16.msra.mxu0 0
      %473 = vmatprep.subr.bf16.mxu0 0
      %474 = vmatpush1.bf16.msra.mxu0 0
      %475 = vmatprep.subr.bf16.mxu0 0
      %476 = vmatpush1.bf16.msra.mxu0 0
      %477 = vmatprep.subr.bf16.mxu0 0
      %478 = vmatpush1.bf16.msra.mxu0 0
      %479 = vmatprep.subr.bf16.mxu0 0
      %480 = vmatpush1.bf16.msra.mxu0 0
      %481 = vmatprep.mubr.bf16.mxu0 0
      %482 = vmatmul.mubr.bf16.gmra.mrb[0].mxu0 %v398
      %v483 = vpop.f32.mrb[0].mxu0
      %v484 = vadd.f32 %v299, %v483
      %v485 = vpop.f32.mrb[0].mxu0
      %v486 = vpop.f32.mrb[0].mxu0
      %v487 = vadd.f32 %v299, %v486
      %v488 = vpop.f32.mrb[0].mxu0
      %489 = vmatprep.mubr.bf16.mxu0 0
      %490 = vmatmul.mubr.bf16.gmra.mrb[0].mxu0 %v401
      %v491 = vpop.f32.mrb[0].mxu0
      %v492 = vadd.f32 %v299, %v491
      %v493 = vpop.f32.mrb[0].mxu0
      %v494 = vpop.f32.mrb[0].mxu0
      %v495 = vadd.f32 %v299, %v494
      %v496 = vpop.f32.mrb[0].mxu0
      %497 = vmatprep.mubr.bf16.mxu0 0
      %498 = vmatmul.mubr.bf16.gmra.mrb[0].mxu0 %v404
      %v499 = vpop.f32.mrb[0].mxu0
      %v500 = vadd.f32 %v299, %v499
      %v501 = vpop.f32.mrb[0].mxu0
      %v502 = vpop.f32.mrb[0].mxu0
      %v503 = vadd.f32 %v299, %v502
      %v504 = vpop.f32.mrb[0].mxu0
      %505 = vmatprep.mubr.bf16.mxu0 0
      %506 = vmatmul.mubr.bf16.gmra.mrb[0].mxu0 %v407
      %v507 = vpop.f32.mrb[0].mxu0
      %v508 = vadd.f32 %v299, %v507
      %v509 = vpop.f32.mrb[0].mxu0
      %v510 = vpop.f32.mrb[0].mxu0
      %v511 = vadd.f32 %v299, %v510
      %v512 = vpop.f32.mrb[0].mxu0
      %513 = vmatprep.mubr.bf16.mxu0 0
      %514 = vmatmul.mubr.bf16.gmra.mrb[0].mxu0 %v410
      %v515 = vpop.f32.mrb[0].mxu0
      %v516 = vadd.f32 %v299, %v515
      %v517 = vpop.f32.mrb[0].mxu0
      %v518 = vpop.f32.mrb[0].mxu0
      %v519 = vadd.f32 %v299, %v518
      %v520 = vpop.f32.mrb[0].mxu0
      %521 = vmatprep.mubr.bf16.mxu0 0
      %522 = vmatmul.mubr.bf16.gmra.mrb[0].mxu0 %v413
      %v523 = vpop.f32.mrb[0].mxu0
      %v524 = vadd.f32 %v299, %v523
      %v525 = vpop.f32.mrb[0].mxu0
      %v526 = vpop.f32.mrb[0].mxu0
      %v527 = vadd.f32 %v299, %v526
      %v528 = vpop.f32.mrb[0].mxu0
      %529 = vmatprep.mubr.bf16.mxu0 0
      %530 = vmatmul.mubr.bf16.gmra.mrb[0].mxu0 %v416
      %v531 = vpop.f32.mrb[0].mxu0
      %v532 = vadd.f32 %v299, %v531
      %v533 = vpop.f32.mrb[0].mxu0
      %v534 = vpop.f32.mrb[0].mxu0
      %v535 = vadd.f32 %v299, %v534
      %v536 = vpop.f32.mrb[0].mxu0
      %537 = vmatprep.mubr.bf16.mxu0 0
      %538 = vmatmul.mubr.bf16.gmra.mrb[0].mxu0 %v419
      %v539 = vpop.f32.mrb[0].mxu0
      %v540 = vadd.f32 %v299, %v539
      %v541 = vpop.f32.mrb[0].mxu0
      %v542 = vpop.f32.mrb[0].mxu0
      %v543 = vadd.f32 %v299, %v542
      %v544 = vpop.f32.mrb[0].mxu0
      %545 = vmatprep.mubr.bf16.mxu0 0
      %546 = vmatmul.mubr.bf16.gmra.mrb[0].mxu0 %v422
      %v547 = vpop.f32.mrb[0].mxu0
      %v548 = vadd.f32 %v299, %v547
      %v549 = vpop.f32.mrb[0].mxu0
      %v550 = vpop.f32.mrb[0].mxu0
      %v551 = vadd.f32 %v299, %v550
      %v552 = vpop.f32.mrb[0].mxu0
      %553 = vmatprep.mubr.bf16.mxu0 0
      %554 = vmatmul.mubr.bf16.gmra.mrb[0].mxu0 %v425
      %v555 = vpop.f32.mrb[0].mxu0
      %v556 = vadd.f32 %v299, %v555
      %v557 = vpop.f32.mrb[0].mxu0
      %v558 = vpop.f32.mrb[0].mxu0
      %v559 = vadd.f32 %v299, %v558
      %v560 = vpop.f32.mrb[0].mxu0
      %561 = vmatprep.mubr.bf16.mxu0 0
      %562 = vmatmul.mubr.bf16.gmra.mrb[0].mxu0 %v428
      %v563 = vpop.f32.mrb[0].mxu0
      %v564 = vadd.f32 %v299, %v563
      %v565 = vpop.f32.mrb[0].mxu0
      %v566 = vpop.f32.mrb[0].mxu0
      %v567 = vadd.f32 %v299, %v566
      %v568 = vpop.f32.mrb[0].mxu0
      %569 = vmatprep.mubr.bf16.mxu0 0
      %570 = vmatmul.mubr.bf16.gmra.mrb[0].mxu0 %v431
      %v571 = vpop.f32.mrb[0].mxu0
      %v572 = vadd.f32 %v299, %v571
      %v573 = vpop.f32.mrb[0].mxu0
      %v574 = vpop.f32.mrb[0].mxu0
      %v575 = vadd.f32 %v299, %v574
      %v576 = vpop.f32.mrb[0].mxu0
      %577 = vmatprep.mubr.bf16.mxu0 0
      %578 = vmatmul.mubr.bf16.gmra.mrb[0].mxu0 %v434
      %v579 = vpop.f32.mrb[0].mxu0
      %v580 = vadd.f32 %v299, %v579
      %v581 = vpop.f32.mrb[0].mxu0
      %v582 = vpop.f32.mrb[0].mxu0
      %v583 = vadd.f32 %v299, %v582
      %v584 = vpop.f32.mrb[0].mxu0
      %585 = vmatprep.mubr.bf16.mxu0 0
      %586 = vmatmul.mubr.bf16.gmra.mrb[0].mxu0 %v437
      %v587 = vpop.f32.mrb[0].mxu0
      %v588 = vadd.f32 %v299, %v587
      %v589 = vpop.f32.mrb[0].mxu0
      %v590 = vpop.f32.mrb[0].mxu0
      %v591 = vadd.f32 %v299, %v590
      %v592 = vpop.f32.mrb[0].mxu0
      %593 = vmatprep.mubr.bf16.mxu0 0
      %594 = vmatmul.mubr.bf16.gmra.mrb[0].mxu0 %v440
      %v595 = vpop.f32.mrb[0].mxu0
      %v596 = vadd.f32 %v299, %v595
      %v597 = vpop.f32.mrb[0].mxu0
      %v598 = vpop.f32.mrb[0].mxu0
      %v599 = vadd.f32 %v299, %v598
      %v600 = vpop.f32.mrb[0].mxu0
      %601 = vmatprep.mubr.bf16.mxu0 0
      %602 = vmatmul.mubr.bf16.gmra.mrb[0].mxu0 %v443
      %v603 = vpop.f32.mrb[0].mxu0
      %v604 = vadd.f32 %v299, %v603
      %v605 = vpop.f32.mrb[0].mxu0
      %v606 = vpop.f32.mrb[0].mxu0
      %v607 = vadd.f32 %v299, %v606
      %v608 = vpop.f32.mrb[0].mxu0
      %609 = vdwg.mxu0
      %v610 = vmax.f32 %v484, 0.0
      %v611 = vmax.f32 %v487, 0.0
      %v612 = vmax.f32 %v492, 0.0
      %v613 = vmax.f32 %v495, 0.0
      %v614 = vmax.f32 %v500, 0.0
      %v615 = vmax.f32 %v503, 0.0
      %v616 = vmax.f32 %v508, 0.0
      %v617 = vmax.f32 %v511, 0.0
      %v618 = vmax.f32 %v516, 0.0
      %v619 = vmax.f32 %v519, 0.0
      %v620 = vmax.f32 %v524, 0.0
      %v621 = vmax.f32 %v527, 0.0
      %v622 = vmax.f32 %v532, 0.0
      %v623 = vmax.f32 %v535, 0.0
      %v624 = vmax.f32 %v540, 0.0
      %v625 = vmax.f32 %v543, 0.0
      %v626 = vmax.f32 %v548, 0.0
      %v627 = vmax.f32 %v551, 0.0
      %v628 = vmax.f32 %v556, 0.0
      %v629 = vmax.f32 %v559, 0.0
      %v630 = vmax.f32 %v564, 0.0
      %v631 = vmax.f32 %v567, 0.0
      %v632 = vmax.f32 %v572, 0.0
      %v633 = vmax.f32 %v575, 0.0
      %v634 = vmax.f32 %v580, 0.0
      %v635 = vmax.f32 %v583, 0.0
      %v636 = vmax.f32 %v588, 0.0
      %v637 = vmax.f32 %v591, 0.0
      %v638 = vmax.f32 %v596, 0.0
      %v639 = vmax.f32 %v599, 0.0
      %v640 = vmax.f32 %v604, 0.0
      %v641 = vmax.f32 %v607, 0.0
      %v642 = vpack.c.bf16 %v611, %v610
      %v643 = vpack.c.bf16 %v613, %v612
      %v644 = vpack.c.bf16 %v615, %v614
      %v645 = vpack.c.bf16 %v617, %v616
      %v646 = vpack.c.bf16 %v619, %v618
      %v647 = vpack.c.bf16 %v621, %v620
      %v648 = vpack.c.bf16 %v623, %v622
      %v649 = vpack.c.bf16 %v625, %v624
      %v650 = vpack.c.bf16 %v627, %v626
      %v651 = vpack.c.bf16 %v629, %v628
      %v652 = vpack.c.bf16 %v631, %v630
      %v653 = vpack.c.bf16 %v633, %v632
      %v654 = vpack.c.bf16 %v635, %v634
      %v655 = vpack.c.bf16 %v637, %v636
      %v656 = vpack.c.bf16 %v639, %v638
      %v657 = vpack.c.bf16 %v641, %v640
      %v674 = vunpack.c.l.b16 %v642
      %v675 = vunpack.c.h.b16 %v642
      %v676 = vunpack.c.l.b16 %v643
      %v677 = vunpack.c.h.b16 %v643
      %v678 = vunpack.c.l.b16 %v644
      %v679 = vunpack.c.h.b16 %v644
      %v680 = vunpack.c.l.b16 %v645
      %v681 = vunpack.c.h.b16 %v645
      %v682 = vunpack.c.l.b16 %v646
      %v683 = vunpack.c.h.b16 %v646
      %v684 = vunpack.c.l.b16 %v647
      %v685 = vunpack.c.h.b16 %v647
      %v686 = vunpack.c.l.b16 %v648
      %v687 = vunpack.c.h.b16 %v648
      %v688 = vunpack.c.l.b16 %v649
      %v689 = vunpack.c.h.b16 %v649
      %v690 = vunpack.c.l.b16 %v650
      %v691 = vunpack.c.h.b16 %v650
      %v692 = vunpack.c.l.b16 %v651
      %v693 = vunpack.c.h.b16 %v651
      %v694 = vunpack.c.l.b16 %v652
      %v695 = vunpack.c.h.b16 %v652
      %v696 = vunpack.c.l.b16 %v653
      %v697 = vunpack.c.h.b16 %v653
      %v698 = vunpack.c.l.b16 %v654
      %v699 = vunpack.c.h.b16 %v654
      %v700 = vunpack.c.l.b16 %v655
      %v701 = vunpack.c.h.b16 %v655
      %v702 = vunpack.c.l.b16 %v656
      %v703 = vunpack.c.h.b16 %v656
      %v704 = vunpack.c.l.b16 %v657
      %v705 = vunpack.c.h.b16 %v657
      %v706 = vpack.c.b16 %v674, %v674
      %v707 = vpack.c.b16 %v675, %v675
      %v708 = vpack.c.b16 %v676, %v676
      %v709 = vpack.c.b16 %v677, %v677
      %v710 = vpack.c.b16 %v678, %v678
      %v711 = vpack.c.b16 %v679, %v679
      %v712 = vpack.c.b16 %v680, %v680
      %v713 = vpack.c.b16 %v681, %v681
      %v714 = vpack.c.b16 %v682, %v682
      %v715 = vpack.c.b16 %v683, %v683
      %v716 = vpack.c.b16 %v684, %v684
      %v717 = vpack.c.b16 %v685, %v685
      %v718 = vpack.c.b16 %v686, %v686
      %v719 = vpack.c.b16 %v687, %v687
      %v720 = vpack.c.b16 %v688, %v688
      %v721 = vpack.c.b16 %v689, %v689
      %v722 = vpack.c.b16 %v690, %v690
      %v723 = vpack.c.b16 %v691, %v691
      %v724 = vpack.c.b16 %v692, %v692
      %v725 = vpack.c.b16 %v693, %v693
      %v726 = vpack.c.b16 %v694, %v694
      %v727 = vpack.c.b16 %v695, %v695
      %v728 = vpack.c.b16 %v696, %v696
      %v729 = vpack.c.b16 %v697, %v697
      %v730 = vpack.c.b16 %v698, %v698
      %v731 = vpack.c.b16 %v699, %v699
      %v732 = vpack.c.b16 %v700, %v700
      %v733 = vpack.c.b16 %v701, %v701
      %v734 = vpack.c.b16 %v702, %v702
      %v735 = vpack.c.b16 %v703, %v703
      %v736 = vpack.c.b16 %v704, %v704
      %v737 = vpack.c.b16 %v705, %v705
      %770 = vst [vmem:[%s254] sm:$0xf] %v706
      %771 = vst [vmem:[%s254 + $0x4] sm:$0xf] %v707
      %772 = vst [vmem:[%s254 + $0x8] sm:$0xf] %v708
      %773 = vst [vmem:[%s254 + $0xc] sm:$0xf] %v709
      %774 = vst [vmem:[%s254 + $0x10] sm:$0xf] %v710
      %775 = vst [vmem:[%s254 + $0x14] sm:$0xf] %v711
      %776 = vst [vmem:[%s254 + $0x18] sm:$0xf] %v712
      %777 = vst [vmem:[%s254 + $0x1c] sm:$0xf] %v713
      %778 = vst [vmem:[%s254 + $0x20] sm:$0xf] %v714
      %779 = vst [vmem:[%s254 + $0x24] sm:$0xf] %v715
      %780 = vst [vmem:[%s254 + $0x28] sm:$0xf] %v716
      %781 = vst [vmem:[%s254 + $0x2c] sm:$0xf] %v717
      %782 = vst [vmem:[%s254 + $0x30] sm:$0xf] %v718
      %783 = vst [vmem:[%s254 + $0x34] sm:$0xf] %v719
      %784 = vst [vmem:[%s254 + $0x38] sm:$0xf] %v720
      %785 = vst [vmem:[%s254 + $0x3c] sm:$0xf] %v721
      %786 = vst [vmem:[%s254 + $0x40] sm:$0xf] %v722
      %787 = vst [vmem:[%s254 + $0x44] sm:$0xf] %v723
      %788 = vst [vmem:[%s254 + $0x48] sm:$0xf] %v724
      %789 = vst [vmem:[%s254 + $0x4c] sm:$0xf] %v725
      %790 = vst [vmem:[%s254 + $0x50] sm:$0xf] %v726
      %791 = vst [vmem:[%s254 + $0x54] sm:$0xf] %v727
      %792 = vst [vmem:[%s254 + $0x58] sm:$0xf] %v728
      %793 = vst [vmem:[%s254 + $0x5c] sm:$0xf] %v729
      %794 = vst [vmem:[%s254 + $0x60] sm:$0xf] %v730
      %795 = vst [vmem:[%s254 + $0x64] sm:$0xf] %v731
      %796 = vst [vmem:[%s254 + $0x68] sm:$0xf] %v732
      %797 = vst [vmem:[%s254 + $0x6c] sm:$0xf] %v733
      %798 = vst [vmem:[%s254 + $0x70] sm:$0xf] %v734
      %799 = vst [vmem:[%s254 + $0x74] sm:$0xf] %v735
      %800 = vst [vmem:[%s254 + $0x78] sm:$0xf] %v736
      %801 = vst [vmem:[%s254 + $0x7c] sm:$0xf] %v737
      %s802 = smul.u32 32, %s20
      %p803 = scmp.lt.s32.totalorder %s19, 1
      %s804 = scalar_select %p803, %s19, 1
      %p805 = scmp.lt.s32.totalorder %s802, 31
      %s806 = scalar_select %p805, %s802, 31
      %p807 = scmp.lt.s32.totalorder %s21, 0
      %s808 = scalar_select %p807, %s21, 0
      %s809 = sadd.s32 %s808, %s806
      %s810 = smul.addr %s804, 32
      %s811 = sadd.s32 %s809, %s810
      %s812 = smul.addr %s811, 4
      %s813 = scalar_lea.vmem %s3, %s812
      // Predicated region
      $region33: #{basic_conv_forward.1} parent=31 // pred_check
        %p814 = pneg %p135
      $region34: #{basic_conv_forward.1} parent=31 // pred_check_branch
        %816 = sbr.rel (%p814) target = $region36
      $region35: #{basic_conv_forward.1} parent=31 // pred_region
        %s817 = smul.u32 32, %s20
      $region36: #{basic_conv_forward.1} parent=31 // pred_fallthru
        _
    $region32: #{basic_conv_forward.1} parent=5 // pred_fallthru
      _
    %p818 = scmp.le.s32.totalorder 2, %s9
    // Predicated region
    $region37: #{basic_conv_forward.1} parent=5 // pred_check
      %p819 = pneg %p818
    $region38: #{basic_conv_forward.1} parent=5 // pred_check_branch
      %821 = sbr.rel (%p819) target = $region40
    $region39: #{basic_conv_forward.1} parent=5 // pred_region
      %s822 = ssub.s32 %s9, 2
      // Predicated region
      $region41: #{basic_conv_forward.1} parent=39 // pred_check
        %p823 = pneg %p141
      $region42: #{basic_conv_forward.1} parent=39 // pred_check_branch
        %825 = sbr.rel (%p823) target = $region44
      $region43: #{basic_conv_forward.1} parent=39 // pred_region
        %s826 = smul.u32 32, %s23
        %p827 = scmp.lt.s32.totalorder %s22, 1
        %s828 = scalar_select %p827, %s22, 1
        %p829 = scmp.lt.s32.totalorder %s826, 31
        %s830 = scalar_select %p829, %s826, 31
        %p831 = scmp.lt.s32.totalorder %s24, 0
        %s832 = scalar_select %p831, %s24, 0
        %s833 = sadd.s32 %s832, %s830
        %s834 = smul.addr %s828, 32
        %s835 = sadd.s32 %s833, %s834
        %s836 = smul.addr %s835, 4
        %s837 = scalar_lea.vmem %s3, %s836
      $region44: #{basic_conv_forward.1} parent=39 // pred_fallthru
        _
    $region40: #{basic_conv_forward.1} parent=5 // pred_fallthru
      _
  $region6: #{basic_conv_forward.1} parent=0 // loop_footer
    %s13 = sadd.s32 1, %s9
  $region7: #{basic_conv_forward.1} parent=0 // loop_footer_branch
    %8 = sbr.rel target = $region3
  $region8: #{basic_conv_forward.1} parent=0 // loop_exit
    _

</llo_original>
